<compile_context>
chip_gen: v7x
topology: tpu7x:2x2x1
jax: 0.10.0
libtpu: 0.0.40
codegen_flags: <defaults>
</compile_context>

<pallas_src>
import functools

import jax
import jax.numpy as jnp
from jax.experimental import pallas as pl
from jax.experimental.pallas import tpu as pltpu


# ----------------------------------------------------------------------------
# Kernels
# ----------------------------------------------------------------------------

def _patch_embed_ln_kernel(x_ref, g_ref, b_ref, o_ref, *, eps):
    """x_ref: (nb, C, tl); g_ref/b_ref: (C, 1); o_ref: (nb, tl, C).

    LN stats in the (C, tl) layout (sublane reduce over C, lane broadcast of
    mu/rsqrt/gamma/beta), then a single transpose of the finished result.
    """
    xf = x_ref[...].astype(jnp.float32)                      # (nb, C, tl)
    mu = jnp.mean(xf, axis=1, keepdims=True)                 # sublane reduce -> (nb, 1, tl)
    xc = xf - mu
    var = jnp.mean(xc * xc, axis=1, keepdims=True)
    y = xc * jax.lax.rsqrt(var + eps)
    y = y * g_ref[...] + b_ref[...]                          # (C, 1) broadcasts over lanes
    o_ref[...] = jnp.swapaxes(y.astype(o_ref.dtype), 1, 2)   # lane-dense (tl, C) store


def _patch_embed_kernel(x_ref, o_ref):
    """norm_layer=None path: transpose (C, tl) -> (tl, C) in the native dtype."""
    o_ref[...] = jnp.swapaxes(x_ref[...], 1, 2).astype(o_ref.dtype)


# ----------------------------------------------------------------------------
# Wrapper
# ----------------------------------------------------------------------------

def _choose_l_tile(l):
    """Largest 128-multiple divisor of L up to 512 (keeps loads/stores unmasked,
    tiles exact, temporaries bounded).  Falls back to full L when L % 128 != 0
    (BlockSpec requires 128-multiples or the full dim on the lane axis)."""
    if l % 128 != 0:
        return l
    for tl in (512, 384, 256, 128):
        if l % tl == 0:
            return tl
    return 128


def patch_embed_forward(x_nchw, gamma=None, beta=None, eps=1e-5):
    """PatchEmbed.forward: (B, C, H, W) -> (B, H*W, C), optional LayerNorm over C."""
    b, c, h, w = x_nchw.shape
    l = h * w
    # Contiguous minor-dim merge: pure metadata reshape in XLA, no HBM round trip.
    x_bcl = x_nchw.reshape(b, c, l)
    itemsize = jnp.dtype(x_nchw.dtype).itemsize

    if b * c * l * itemsize <= (2 << 20):
        # Tiny problem: one block, one grid step (per-step overhead dominates here).
        nb, tl = b, l
        grid = (1, 1)
    else:
        nb, tl = 1, _choose_l_tile(l)
        grid = (b, l // tl)

    x_spec = pl.BlockSpec((nb, c, tl), lambda i, j: (i, 0, j))
    o_spec = pl.BlockSpec((nb, tl, c), lambda i, j: (i, j, 0))
    out_shape = jax.ShapeDtypeStruct((b, l, c), x_nchw.dtype)

    # VMEM budget per step: 2x double-buffered input + 2x output blocks + ~4 f32
    # temporaries ~= 8 * block_f32.  Only raise the scoped limit if we'd exceed
    # v5e's 16 MiB default; cap at v7x's 64 MiB physical VMEM.
    block_f32 = nb * c * tl * 4
    cp_kwargs = dict(dimension_semantics=("parallel", "parallel"))
    vmem_need = 8 * block_f32
    if vmem_need > (16 << 20):
        cp_kwargs["vmem_limit_bytes"] = min(2 * vmem_need, 64 << 20)
    cp = pltpu.CompilerParams(**cp_kwargs)

    if gamma is None:
        return pl.pallas_call(
            _patch_embed_kernel,
            out_shape=out_shape,
            grid=grid,
            in_specs=[x_spec],
            out_specs=o_spec,
            compiler_params=cp,
        )(x_bcl)

    return pl.pallas_call(
        functools.partial(_patch_embed_ln_kernel, eps=eps),
        out_shape=out_shape,
        grid=grid,
        in_specs=[x_spec,
                  pl.BlockSpec((c, 1), lambda i, j: (0, 0)),   # gamma resident in VMEM
                  pl.BlockSpec((c, 1), lambda i, j: (0, 0))],  # beta  resident in VMEM
        out_specs=o_spec,
        compiler_params=cp,
    )(x_bcl, gamma.reshape(c, 1), beta.reshape(c, 1))


# ----------------------------------------------------------------------------
# Pure-JAX reference (mirrors the PyTorch module)
# ----------------------------------------------------------------------------

def patch_embed_reference(x_nchw, gamma=None, beta=None, eps=1e-5):
    b, c, h, w = x_nchw.shape
    t = x_nchw.reshape(b, c, h * w).transpose(0, 2, 1)     # flatten(2).transpose(1, 2)
    if gamma is None:
        return t
    mu = jnp.mean(t, axis=-1, keepdims=True)
    var = jnp.mean((t - mu) ** 2, axis=-1, keepdims=True)
    return (t - mu) * jax.lax.rsqrt(var + eps) * gamma + beta


# ----------------------------------------------------------------------------
# Main
# ----------------------------------------------------------------------------

if __name__ == "__main__":
    key = jax.random.PRNGKey(0)
    kx, kg, kb, kx2 = jax.random.split(key, 4)

    # Small shape: embed_dim=128 channels over an 8x8 patch grid
    # (e.g. img_size=32, patch_size=4) -> collapsed single-step grid path.
    B, C, H, W = 2, 128, 8, 8
    x = jax.random.normal(kx, (B, C, H, W), jnp.float32)
    gamma = 1.0 + 0.02 * jax.random.normal(kg, (C,), jnp.float32)
    beta = 0.02 * jax.random.normal(kb, (C,), jnp.float32)

    out_ln = jax.block_until_ready(patch_embed_forward(x, gamma, beta))      # norm path
    out_plain = jax.block_until_ready(patch_embed_forward(x))                # norm_layer=None
    ref_ln = patch_embed_reference(x, gamma, beta)
    ref_plain = patch_embed_reference(x)

    assert out_ln.shape == (B, H * W, C), out_ln.shape
    assert out_plain.shape == (B, H * W, C), out_plain.shape
    assert bool(jnp.all(jnp.isfinite(out_ln)))
    assert bool(jnp.allclose(out_ln, ref_ln, atol=1e-5, rtol=1e-5))
    assert bool(jnp.allclose(out_plain, ref_plain, atol=0.0, rtol=0.0))

    # Larger spatial grid -> exercises the tiled (B, L//tl) parallel-grid path.
    B2, C2, H2, W2 = 2, 128, 64, 64
    x2 = jax.random.normal(kx2, (B2, C2, H2, W2), jnp.float32)
    out2 = jax.block_until_ready(patch_embed_forward(x2, gamma, beta))
    ref2 = patch_embed_reference(x2, gamma, beta)
    assert out2.shape == (B2, H2 * W2, C2), out2.shape
    assert bool(jnp.allclose(out2, ref2, atol=1e-5, rtol=1e-5))

    print("KERNEL_OK")
</pallas_src>

<mosaic_0001>
module attributes {stable_mosaic.version = 11 : i64} {
  func.func @_patch_embed_ln_kernel(%arg0: i32, %arg1: i32, %arg2: memref<2x128x64xf32, #tpu.memory_space<vmem>>, %arg3: memref<128x1xf32, #tpu.memory_space<vmem>>, %arg4: memref<128x1xf32, #tpu.memory_space<vmem>>, %arg5: memref<2x64x128xf32, #tpu.memory_space<vmem>>) attributes {dimension_semantics = [#tpu.dimension_semantics<parallel>, #tpu.dimension_semantics<parallel>], iteration_bounds = array<i64: 1, 1>, scalar_prefetch = 0 : i64, scratch_operands = 0 : i64, tpu.core_type = #tpu.core_type<tc>, window_params = [{transform_indices = @transform_0, window_bounds = array<i64: 2, 128, 64>}, {pipeline_mode = #tpu.pipeline_mode<synchronous>, transform_indices = @transform_1, window_bounds = array<i64: 128, 1>}, {pipeline_mode = #tpu.pipeline_mode<synchronous>, transform_indices = @transform_2, window_bounds = array<i64: 128, 1>}, {transform_indices = @transform_3, window_bounds = array<i64: 2, 64, 128>}]} {
    %c0 = arith.constant 0 : index
    %c0_0 = arith.constant 0 : index
    %c0_1 = arith.constant 0 : index
    %0 = vector.load %arg2[%c0, %c0_0, %c0_1] : memref<2x128x64xf32, #tpu.memory_space<vmem>>, vector<2x128x64xf32>
    %cst = arith.constant dense<0.000000e+00> : vector<2x64xf32>
    %1 = vector.multi_reduction <add>, %0, %cst [1] : vector<2x128x64xf32> to vector<2x64xf32>
    %2 = vector.shape_cast %1 : vector<2x64xf32> to vector<2x1x64xf32>
    %cst_2 = arith.constant 1.280000e+02 : f32
    %3 = vector.broadcast %cst_2 : f32 to vector<2x1x64xf32>
    %4 = arith.divf %2, %3 : vector<2x1x64xf32>
    %5 = vector.broadcast %4 : vector<2x1x64xf32> to vector<2x128x64xf32>
    %6 = arith.subf %0, %5 : vector<2x128x64xf32>
    %7 = arith.mulf %6, %6 : vector<2x128x64xf32>
    %cst_3 = arith.constant dense<0.000000e+00> : vector<2x64xf32>
    %8 = vector.multi_reduction <add>, %7, %cst_3 [1] : vector<2x128x64xf32> to vector<2x64xf32>
    %9 = vector.shape_cast %8 : vector<2x64xf32> to vector<2x1x64xf32>
    %cst_4 = arith.constant 1.280000e+02 : f32
    %10 = vector.broadcast %cst_4 : f32 to vector<2x1x64xf32>
    %11 = arith.divf %9, %10 : vector<2x1x64xf32>
    %cst_5 = arith.constant 9.99999974E-6 : f32
    %12 = vector.broadcast %cst_5 : f32 to vector<2x1x64xf32>
    %13 = arith.addf %11, %12 : vector<2x1x64xf32>
    %14 = math.rsqrt %13 : vector<2x1x64xf32>
    %15 = vector.broadcast %14 : vector<2x1x64xf32> to vector<2x128x64xf32>
    %16 = arith.mulf %6, %15 : vector<2x128x64xf32>
    %c0_6 = arith.constant 0 : index
    %c0_7 = arith.constant 0 : index
    %17 = vector.load %arg3[%c0_6, %c0_7] : memref<128x1xf32, #tpu.memory_space<vmem>>, vector<128x1xf32>
    %18 = vector.shape_cast %17 : vector<128x1xf32> to vector<1x128x1xf32>
    %19 = vector.broadcast %18 : vector<1x128x1xf32> to vector<2x128x64xf32>
    %20 = arith.mulf %16, %19 : vector<2x128x64xf32>
    %c0_8 = arith.constant 0 : index
    %c0_9 = arith.constant 0 : index
    %21 = vector.load %arg4[%c0_8, %c0_9] : memref<128x1xf32, #tpu.memory_space<vmem>>, vector<128x1xf32>
    %22 = vector.shape_cast %21 : vector<128x1xf32> to vector<1x128x1xf32>
    %23 = vector.broadcast %22 : vector<1x128x1xf32> to vector<2x128x64xf32>
    %24 = arith.addf %20, %23 : vector<2x128x64xf32>
    %25 = tpu.transpose %24, [0, 2, 1] : vector<2x128x64xf32> -> vector<2x64x128xf32>
    %c0_10 = arith.constant 0 : index
    %c0_11 = arith.constant 0 : index
    %c0_12 = arith.constant 0 : index
    %26 = vector.load %arg5[%c0_10, %c0_11, %c0_12] : memref<2x64x128xf32, #tpu.memory_space<vmem>>, vector<2x64x128xf32>
    tpu.vector_store %arg5[%c0_10, %c0_11, %c0_12], %25 {strides = array<i32>} : memref<2x64x128xf32, #tpu.memory_space<vmem>>, vector<2x64x128xf32>,
    return
  }
  func.func @transform_0(%arg0: i32, %arg1: i32) -> (i32, i32, i32) {
    %c0_i32 = arith.constant 0 : i32
    %c0_i32_0 = arith.constant 0 : i32
    return %arg0, %c0_i32, %arg1 : i32, i32, i32
  }
  func.func @transform_1(%arg0: i32, %arg1: i32) -> (i32, i32) {
    %c0_i32 = arith.constant 0 : i32
    %c0_i32_0 = arith.constant 0 : i32
    %c0_i32_1 = arith.constant 0 : i32
    return %c0_i32, %c0_i32_0 : i32, i32
  }
  func.func @transform_2(%arg0: i32, %arg1: i32) -> (i32, i32) {
    %c0_i32 = arith.constant 0 : i32
    %c0_i32_0 = arith.constant 0 : i32
    %c0_i32_1 = arith.constant 0 : i32
    return %c0_i32, %c0_i32_0 : i32, i32
  }
  func.func @transform_3(%arg0: i32, %arg1: i32) -> (i32, i32, i32) {
    %c0_i32 = arith.constant 0 : i32
    %c0_i32_0 = arith.constant 0 : i32
    return %arg0, %arg1, %c0_i32 : i32, i32, i32
  }
}

</mosaic_0001>

<llo_original>
// kernel: tpu_custom_call.1
$region0: #{tpu_custom_call.1}
  #allocation0 [shape = 'u32[]', space=smem, size = 0x4, offset = 0x4, fixed_abs, tag = 'smem constant byte address 0x4 - core index']
  #allocation1 [shape = 'u32[144,128]{1,0:T(1,128)}', space=vmem, size = 0x12000, scoped, tag = 'internal scratch']
  %s0 = inlined_call_operand.vmem [shape: f32[2,128,64], index: 0, kind: input, shape index: {}]
  %s1 = inlined_call_operand.vmem [shape: f32[128,1], index: 1, kind: input, shape index: {}]
  %s2 = inlined_call_operand.vmem [shape: f32[128,1], index: 2, kind: input, shape index: {}]
  %s3 = inlined_call_operand.hbm [shape: f32[2,64,128], index: 3, kind: output, shape index: {}]
  %s4 = sld [smem:[#allocation0]]
  $region22: #{tpu_custom_call.1} parent=0
    _
  %s6 = ssub.s32 1, %s4
  %s7 = scalar_select 0, %s6, %s4
  $region1: #{tpu_custom_call.1} parent=0
    #allocation2 [shape = 'u8[65536]{0}', space=vmem, size = 0x10000, scoped, tag = 'output window, operand 0, single buffered']
    #allocation3 [shape = 's32[1]{0}', space=sflag, size = 0x4, scoped, tag = 'scoped memory for tpu_custom_call.1']
    %8 = vsyncpa [#allocation3], 0
    // Predicated region
    $region2: #{tpu_custom_call.1} parent=1 // pred_check
      _
    $region3: #{tpu_custom_call.1} parent=1 // pred_check_branch
      %10 = sbr.rel (0) target = $region5
    $region4: #{tpu_custom_call.1} parent=1 // pred_region
      _
    $region5: #{tpu_custom_call.1} parent=1 // pred_fallthru
      _
    // Predicated region
    $region6: #{tpu_custom_call.1} parent=1 // pred_check
      _
    $region7: #{tpu_custom_call.1} parent=1 // pred_check_branch
      %12 = sbr.rel (0) target = $region9
    $region8: #{tpu_custom_call.1} parent=1 // pred_region
      _
    $region9: #{tpu_custom_call.1} parent=1 // pred_fallthru
      _
    // Predicated region
    $region10: #{tpu_custom_call.1} parent=1 // pred_check
      _
    $region11: #{tpu_custom_call.1} parent=1 // pred_check_branch
      %14 = sbr.rel (0) target = $region13
    $region12: #{tpu_custom_call.1} parent=1 // pred_region
      _
    $region13: #{tpu_custom_call.1} parent=1 // pred_fallthru
      _
    %v15 = vld [vmem:[%s0] sm:$0xff]
    %v16 = vld [vmem:[%s0 + $0x8] sm:$0xff]
    %v17 = vld [vmem:[%s0 + $0x10] sm:$0xff]
    %v18 = vld [vmem:[%s0 + $0x18] sm:$0xff]
    %v19 = vld [vmem:[%s0 + $0x20] sm:$0xff]
    %v20 = vld [vmem:[%s0 + $0x28] sm:$0xff]
    %v21 = vld [vmem:[%s0 + $0x30] sm:$0xff]
    %v22 = vld [vmem:[%s0 + $0x38] sm:$0xff]
    %v23 = vld [vmem:[%s0 + $0x40] sm:$0xff]
    %v24 = vld [vmem:[%s0 + $0x48] sm:$0xff]
    %v25 = vld [vmem:[%s0 + $0x50] sm:$0xff]
    %v26 = vld [vmem:[%s0 + $0x58] sm:$0xff]
    %v27 = vld [vmem:[%s0 + $0x60] sm:$0xff]
    %v28 = vld [vmem:[%s0 + $0x68] sm:$0xff]
    %v29 = vld [vmem:[%s0 + $0x70] sm:$0xff]
    %v30 = vld [vmem:[%s0 + $0x78] sm:$0xff]
    %v31 = vld [vmem:[%s0 + $0x80] sm:$0xff]
    %v32 = vld [vmem:[%s0 + $0x88] sm:$0xff]
    %v33 = vld [vmem:[%s0 + $0x90] sm:$0xff]
    %v34 = vld [vmem:[%s0 + $0x98] sm:$0xff]
    %v35 = vld [vmem:[%s0 + $0xa0] sm:$0xff]
    %v36 = vld [vmem:[%s0 + $0xa8] sm:$0xff]
    %v37 = vld [vmem:[%s0 + $0xb0] sm:$0xff]
    %v38 = vld [vmem:[%s0 + $0xb8] sm:$0xff]
    %v39 = vld [vmem:[%s0 + $0xc0] sm:$0xff]
    %v40 = vld [vmem:[%s0 + $0xc8] sm:$0xff]
    %v41 = vld [vmem:[%s0 + $0xd0] sm:$0xff]
    %v42 = vld [vmem:[%s0 + $0xd8] sm:$0xff]
    %v43 = vld [vmem:[%s0 + $0xe0] sm:$0xff]
    %v44 = vld [vmem:[%s0 + $0xe8] sm:$0xff]
    %v45 = vld [vmem:[%s0 + $0xf0] sm:$0xff]
    %v46 = vld [vmem:[%s0 + $0xf8] sm:$0xff]
    %vm47 = vcmask 523264
    %v48 = vsel %vm47, %v15, 0.0
    %v49 = vsel %vm47, %v16, 0.0
    %v50 = vadd.f32 %v48, %v49
    %v51 = vsel %vm47, %v17, 0.0
    %v52 = vadd.f32 %v50, %v51
    %v53 = vsel %vm47, %v18, 0.0
    %v54 = vadd.f32 %v52, %v53
    %v55 = vsel %vm47, %v19, 0.0
    %v56 = vadd.f32 %v54, %v55
    %v57 = vsel %vm47, %v20, 0.0
    %v58 = vadd.f32 %v56, %v57
    %v59 = vsel %vm47, %v21, 0.0
    %v60 = vadd.f32 %v58, %v59
    %v61 = vsel %vm47, %v22, 0.0
    %v62 = vadd.f32 %v60, %v61
    %v63 = vsel %vm47, %v23, 0.0
    %v64 = vadd.f32 %v62, %v63
    %v65 = vsel %vm47, %v24, 0.0
    %v66 = vadd.f32 %v64, %v65
    %v67 = vsel %vm47, %v25, 0.0
    %v68 = vadd.f32 %v66, %v67
    %v69 = vsel %vm47, %v26, 0.0
    %v70 = vadd.f32 %v68, %v69
    %v71 = vsel %vm47, %v27, 0.0
    %v72 = vadd.f32 %v70, %v71
    %v73 = vsel %vm47, %v28, 0.0
    %v74 = vadd.f32 %v72, %v73
    %v75 = vsel %vm47, %v29, 0.0
    %v76 = vadd.f32 %v74, %v75
    %v77 = vsel %vm47, %v30, 0.0
    %v78 = vadd.f32 %v76, %v77
    %v79 = vrot.slane %v78, 4
    %v80 = vadd.f32 %v78, %v79
    %v81 = vrot.slane %v80, 2
    %v82 = vadd.f32 %v80, %v81
    %v83 = vrot.slane %v82, 1
    %v84 = vadd.f32 %v82, %v83
    %v85 = vsel %vm47, %v31, 0.0
    %v86 = vsel %vm47, %v32, 0.0
    %v87 = vadd.f32 %v85, %v86
    %v88 = vsel %vm47, %v33, 0.0
    %v89 = vadd.f32 %v87, %v88
    %v90 = vsel %vm47, %v34, 0.0
    %v91 = vadd.f32 %v89, %v90
    %v92 = vsel %vm47, %v35, 0.0
    %v93 = vadd.f32 %v91, %v92
    %v94 = vsel %vm47, %v36, 0.0
    %v95 = vadd.f32 %v93, %v94
    %v96 = vsel %vm47, %v37, 0.0
    %v97 = vadd.f32 %v95, %v96
    %v98 = vsel %vm47, %v38, 0.0
    %v99 = vadd.f32 %v97, %v98
    %v100 = vsel %vm47, %v39, 0.0
    %v101 = vadd.f32 %v99, %v100
    %v102 = vsel %vm47, %v40, 0.0
    %v103 = vadd.f32 %v101, %v102
    %v104 = vsel %vm47, %v41, 0.0
    %v105 = vadd.f32 %v103, %v104
    %v106 = vsel %vm47, %v42, 0.0
    %v107 = vadd.f32 %v105, %v106
    %v108 = vsel %vm47, %v43, 0.0
    %v109 = vadd.f32 %v107, %v108
    %v110 = vsel %vm47, %v44, 0.0
    %v111 = vadd.f32 %v109, %v110
    %v112 = vsel %vm47, %v45, 0.0
    %v113 = vadd.f32 %v111, %v112
    %v114 = vsel %vm47, %v46, 0.0
    %v115 = vadd.f32 %v113, %v114
    %v116 = vrot.slane %v115, 4
    %v117 = vadd.f32 %v115, %v116
    %v118 = vrot.slane %v117, 2
    %v119 = vadd.f32 %v117, %v118
    %v120 = vrot.slane %v119, 1
    %v121 = vadd.f32 %v119, %v120
    %v122 = vrcp.pop 128.0
    %v123 = vmul.f32 %v84, %v122
    %v124 = vmul.f32 %v121, %v122
    %v125 = vsub.f32 %v15, %v123
    %v126 = vsub.f32 %v16, %v123
    %v127 = vsub.f32 %v17, %v123
    %v128 = vsub.f32 %v18, %v123
    %v129 = vsub.f32 %v19, %v123
    %v130 = vsub.f32 %v20, %v123
    %v131 = vsub.f32 %v21, %v123
    %v132 = vsub.f32 %v22, %v123
    %v133 = vsub.f32 %v23, %v123
    %v134 = vsub.f32 %v24, %v123
    %v135 = vsub.f32 %v25, %v123
    %v136 = vsub.f32 %v26, %v123
    %v137 = vsub.f32 %v27, %v123
    %v138 = vsub.f32 %v28, %v123
    %v139 = vsub.f32 %v29, %v123
    %v140 = vsub.f32 %v30, %v123
    %v141 = vsub.f32 %v31, %v124
    %v142 = vsub.f32 %v32, %v124
    %v143 = vsub.f32 %v33, %v124
    %v144 = vsub.f32 %v34, %v124
    %v145 = vsub.f32 %v35, %v124
    %v146 = vsub.f32 %v36, %v124
    %v147 = vsub.f32 %v37, %v124
    %v148 = vsub.f32 %v38, %v124
    %v149 = vsub.f32 %v39, %v124
    %v150 = vsub.f32 %v40, %v124
    %v151 = vsub.f32 %v41, %v124
    %v152 = vsub.f32 %v42, %v124
    %v153 = vsub.f32 %v43, %v124
    %v154 = vsub.f32 %v44, %v124
    %v155 = vsub.f32 %v45, %v124
    %v156 = vsub.f32 %v46, %v124
    %v157 = vmul.f32 %v125, %v125
    %v158 = vmul.f32 %v126, %v126
    %v159 = vmul.f32 %v127, %v127
    %v160 = vmul.f32 %v128, %v128
    %v161 = vmul.f32 %v129, %v129
    %v162 = vmul.f32 %v130, %v130
    %v163 = vmul.f32 %v131, %v131
    %v164 = vmul.f32 %v132, %v132
    %v165 = vmul.f32 %v133, %v133
    %v166 = vmul.f32 %v134, %v134
    %v167 = vmul.f32 %v135, %v135
    %v168 = vmul.f32 %v136, %v136
    %v169 = vmul.f32 %v137, %v137
    %v170 = vmul.f32 %v138, %v138
    %v171 = vmul.f32 %v139, %v139
    %v172 = vmul.f32 %v140, %v140
    %v173 = vmul.f32 %v141, %v141
    %v174 = vmul.f32 %v142, %v142
    %v175 = vmul.f32 %v143, %v143
    %v176 = vmul.f32 %v144, %v144
    %v177 = vmul.f32 %v145, %v145
    %v178 = vmul.f32 %v146, %v146
    %v179 = vmul.f32 %v147, %v147
    %v180 = vmul.f32 %v148, %v148
    %v181 = vmul.f32 %v149, %v149
    %v182 = vmul.f32 %v150, %v150
    %v183 = vmul.f32 %v151, %v151
    %v184 = vmul.f32 %v152, %v152
    %v185 = vmul.f32 %v153, %v153
    %v186 = vmul.f32 %v154, %v154
    %v187 = vmul.f32 %v155, %v155
    %v188 = vmul.f32 %v156, %v156
    %v189 = vsel %vm47, %v157, 0.0
    %v190 = vsel %vm47, %v158, 0.0
    %v191 = vadd.f32 %v189, %v190
    %v192 = vsel %vm47, %v159, 0.0
    %v193 = vadd.f32 %v191, %v192
    %v194 = vsel %vm47, %v160, 0.0
    %v195 = vadd.f32 %v193, %v194
    %v196 = vsel %vm47, %v161, 0.0
    %v197 = vadd.f32 %v195, %v196
    %v198 = vsel %vm47, %v162, 0.0
    %v199 = vadd.f32 %v197, %v198
    %v200 = vsel %vm47, %v163, 0.0
    %v201 = vadd.f32 %v199, %v200
    %v202 = vsel %vm47, %v164, 0.0
    %v203 = vadd.f32 %v201, %v202
    %v204 = vsel %vm47, %v165, 0.0
    %v205 = vadd.f32 %v203, %v204
    %v206 = vsel %vm47, %v166, 0.0
    %v207 = vadd.f32 %v205, %v206
    %v208 = vsel %vm47, %v167, 0.0
    %v209 = vadd.f32 %v207, %v208
    %v210 = vsel %vm47, %v168, 0.0
    %v211 = vadd.f32 %v209, %v210
    %v212 = vsel %vm47, %v169, 0.0
    %v213 = vadd.f32 %v211, %v212
    %v214 = vsel %vm47, %v170, 0.0
    %v215 = vadd.f32 %v213, %v214
    %v216 = vsel %vm47, %v171, 0.0
    %v217 = vadd.f32 %v215, %v216
    %v218 = vsel %vm47, %v172, 0.0
    %v219 = vadd.f32 %v217, %v218
    %v220 = vrot.slane %v219, 4
    %v221 = vadd.f32 %v219, %v220
    %v222 = vrot.slane %v221, 2
    %v223 = vadd.f32 %v221, %v222
    %v224 = vrot.slane %v223, 1
    %v225 = vadd.f32 %v223, %v224
    %v226 = vsel %vm47, %v173, 0.0
    %v227 = vsel %vm47, %v174, 0.0
    %v228 = vadd.f32 %v226, %v227
    %v229 = vsel %vm47, %v175, 0.0
    %v230 = vadd.f32 %v228, %v229
    %v231 = vsel %vm47, %v176, 0.0
    %v232 = vadd.f32 %v230, %v231
    %v233 = vsel %vm47, %v177, 0.0
    %v234 = vadd.f32 %v232, %v233
    %v235 = vsel %vm47, %v178, 0.0
    %v236 = vadd.f32 %v234, %v235
    %v237 = vsel %vm47, %v179, 0.0
    %v238 = vadd.f32 %v236, %v237
    %v239 = vsel %vm47, %v180, 0.0
    %v240 = vadd.f32 %v238, %v239
    %v241 = vsel %vm47, %v181, 0.0
    %v242 = vadd.f32 %v240, %v241
    %v243 = vsel %vm47, %v182, 0.0
    %v244 = vadd.f32 %v242, %v243
    %v245 = vsel %vm47, %v183, 0.0
    %v246 = vadd.f32 %v244, %v245
    %v247 = vsel %vm47, %v184, 0.0
    %v248 = vadd.f32 %v246, %v247
    %v249 = vsel %vm47, %v185, 0.0
    %v250 = vadd.f32 %v248, %v249
    %v251 = vsel %vm47, %v186, 0.0
    %v252 = vadd.f32 %v250, %v251
    %v253 = vsel %vm47, %v187, 0.0
    %v254 = vadd.f32 %v252, %v253
    %v255 = vsel %vm47, %v188, 0.0
    %v256 = vadd.f32 %v254, %v255
    %v257 = vrot.slane %v256, 4
    %v258 = vadd.f32 %v256, %v257
    %v259 = vrot.slane %v258, 2
    %v260 = vadd.f32 %v258, %v259
    %v261 = vrot.slane %v260, 1
    %v262 = vadd.f32 %v260, %v261
    %v263 = vmul.f32 %v225, %v122
    %v264 = vmul.f32 %v262, %v122
    %v265 = vadd.f32 %v263, 1e-05
    %v266 = vadd.f32 %v264, 1e-05
    %v267 = vrsqrt.pop %v265
    %v268 = vrsqrt.pop %v266
    %v269 = vmul.f32 %v125, %v267
    %v270 = vmul.f32 %v126, %v267
    %v271 = vmul.f32 %v127, %v267
    %v272 = vmul.f32 %v128, %v267
    %v273 = vmul.f32 %v129, %v267
    %v274 = vmul.f32 %v130, %v267
    %v275 = vmul.f32 %v131, %v267
    %v276 = vmul.f32 %v132, %v267
    %v277 = vmul.f32 %v133, %v267
    %v278 = vmul.f32 %v134, %v267
    %v279 = vmul.f32 %v135, %v267
    %v280 = vmul.f32 %v136, %v267
    %v281 = vmul.f32 %v137, %v267
    %v282 = vmul.f32 %v138, %v267
    %v283 = vmul.f32 %v139, %v267
    %v284 = vmul.f32 %v140, %v267
    %v285 = vmul.f32 %v141, %v268
    %v286 = vmul.f32 %v142, %v268
    %v287 = vmul.f32 %v143, %v268
    %v288 = vmul.f32 %v144, %v268
    %v289 = vmul.f32 %v145, %v268
    %v290 = vmul.f32 %v146, %v268
    %v291 = vmul.f32 %v147, %v268
    %v292 = vmul.f32 %v148, %v268
    %v293 = vmul.f32 %v149, %v268
    %v294 = vmul.f32 %v150, %v268
    %v295 = vmul.f32 %v151, %v268
    %v296 = vmul.f32 %v152, %v268
    %v297 = vmul.f32 %v153, %v268
    %v298 = vmul.f32 %v154, %v268
    %v299 = vmul.f32 %v155, %v268
    %v300 = vmul.f32 %v156, %v268
    %v301 = vld [vmem:[%s1] sm:$0xff]
    %v302 = vld [vmem:[%s1 + $0x8] sm:$0xff]
    %v303 = vld [vmem:[%s1 + $0x10] sm:$0xff]
    %v304 = vld [vmem:[%s1 + $0x18] sm:$0xff]
    %v305 = vld [vmem:[%s1 + $0x20] sm:$0xff]
    %v306 = vld [vmem:[%s1 + $0x28] sm:$0xff]
    %v307 = vld [vmem:[%s1 + $0x30] sm:$0xff]
    %v308 = vld [vmem:[%s1 + $0x38] sm:$0xff]
    %v309 = vld [vmem:[%s1 + $0x40] sm:$0xff]
    %v310 = vld [vmem:[%s1 + $0x48] sm:$0xff]
    %v311 = vld [vmem:[%s1 + $0x50] sm:$0xff]
    %v312 = vld [vmem:[%s1 + $0x58] sm:$0xff]
    %v313 = vld [vmem:[%s1 + $0x60] sm:$0xff]
    %v314 = vld [vmem:[%s1 + $0x68] sm:$0xff]
    %v315 = vld [vmem:[%s1 + $0x70] sm:$0xff]
    %v316 = vld [vmem:[%s1 + $0x78] sm:$0xff]
    %318 = vset.pattern.permute.xlu0 0
    %319 = vperm.xlu0 %318, %v301
    %v320 = vpop.permute.xlu0 %319
    %323 = vset.pattern.permute.xlu0 0
    %324 = vperm.xlu0 %323, %v302
    %v325 = vpop.permute.xlu0 %324
    %328 = vset.pattern.permute.xlu0 0
    %329 = vperm.xlu0 %328, %v303
    %v330 = vpop.permute.xlu0 %329
    %333 = vset.pattern.permute.xlu0 0
    %334 = vperm.xlu0 %333, %v304
    %v335 = vpop.permute.xlu0 %334
    %338 = vset.pattern.permute.xlu0 0
    %339 = vperm.xlu0 %338, %v305
    %v340 = vpop.permute.xlu0 %339
    %343 = vset.pattern.permute.xlu0 0
    %344 = vperm.xlu0 %343, %v306
    %v345 = vpop.permute.xlu0 %344
    %348 = vset.pattern.permute.xlu0 0
    %349 = vperm.xlu0 %348, %v307
    %v350 = vpop.permute.xlu0 %349
    %353 = vset.pattern.permute.xlu0 0
    %354 = vperm.xlu0 %353, %v308
    %v355 = vpop.permute.xlu0 %354
    %358 = vset.pattern.permute.xlu0 0
    %359 = vperm.xlu0 %358, %v309
    %v360 = vpop.permute.xlu0 %359
    %363 = vset.pattern.permute.xlu0 0
    %364 = vperm.xlu0 %363, %v310
    %v365 = vpop.permute.xlu0 %364
    %368 = vset.pattern.permute.xlu0 0
    %369 = vperm.xlu0 %368, %v311
    %v370 = vpop.permute.xlu0 %369
    %373 = vset.pattern.permute.xlu0 0
    %374 = vperm.xlu0 %373, %v312
    %v375 = vpop.permute.xlu0 %374
    %378 = vset.pattern.permute.xlu0 0
    %379 = vperm.xlu0 %378, %v313
    %v380 = vpop.permute.xlu0 %379
    %383 = vset.pattern.permute.xlu0 0
    %384 = vperm.xlu0 %383, %v314
    %v385 = vpop.permute.xlu0 %384
    %388 = vset.pattern.permute.xlu0 0
    %389 = vperm.xlu0 %388, %v315
    %v390 = vpop.permute.xlu0 %389
    %393 = vset.pattern.permute.xlu0 0
    %394 = vperm.xlu0 %393, %v316
    %v395 = vpop.permute.xlu0 %394
    %v397 = vmul.f32 %v269, %v320
    %v398 = vmul.f32 %v270, %v325
    %v399 = vmul.f32 %v271, %v330
    %v400 = vmul.f32 %v272, %v335
    %v401 = vmul.f32 %v273, %v340
    %v402 = vmul.f32 %v274, %v345
    %v403 = vmul.f32 %v275, %v350
    %v404 = vmul.f32 %v276, %v355
    %v405 = vmul.f32 %v277, %v360
    %v406 = vmul.f32 %v278, %v365
    %v407 = vmul.f32 %v279, %v370
    %v408 = vmul.f32 %v280, %v375
    %v409 = vmul.f32 %v281, %v380
    %v410 = vmul.f32 %v282, %v385
    %v411 = vmul.f32 %v283, %v390
    %v412 = vmul.f32 %v284, %v395
    %v413 = vmul.f32 %v285, %v320
    %v414 = vmul.f32 %v286, %v325
    %v415 = vmul.f32 %v287, %v330
    %v416 = vmul.f32 %v288, %v335
    %v417 = vmul.f32 %v289, %v340
    %v418 = vmul.f32 %v290, %v345
    %v419 = vmul.f32 %v291, %v350
    %v420 = vmul.f32 %v292, %v355
    %v421 = vmul.f32 %v293, %v360
    %v422 = vmul.f32 %v294, %v365
    %v423 = vmul.f32 %v295, %v370
    %v424 = vmul.f32 %v296, %v375
    %v425 = vmul.f32 %v297, %v380
    %v426 = vmul.f32 %v298, %v385
    %v427 = vmul.f32 %v299, %v390
    %v428 = vmul.f32 %v300, %v395
    %v429 = vld [vmem:[%s2] sm:$0xff]
    %v430 = vld [vmem:[%s2 + $0x8] sm:$0xff]
    %v431 = vld [vmem:[%s2 + $0x10] sm:$0xff]
    %v432 = vld [vmem:[%s2 + $0x18] sm:$0xff]
    %v433 = vld [vmem:[%s2 + $0x20] sm:$0xff]
    %v434 = vld [vmem:[%s2 + $0x28] sm:$0xff]
    %v435 = vld [vmem:[%s2 + $0x30] sm:$0xff]
    %v436 = vld [vmem:[%s2 + $0x38] sm:$0xff]
    %v437 = vld [vmem:[%s2 + $0x40] sm:$0xff]
    %v438 = vld [vmem:[%s2 + $0x48] sm:$0xff]
    %v439 = vld [vmem:[%s2 + $0x50] sm:$0xff]
    %v440 = vld [vmem:[%s2 + $0x58] sm:$0xff]
    %v441 = vld [vmem:[%s2 + $0x60] sm:$0xff]
    %v442 = vld [vmem:[%s2 + $0x68] sm:$0xff]
    %v443 = vld [vmem:[%s2 + $0x70] sm:$0xff]
    %v444 = vld [vmem:[%s2 + $0x78] sm:$0xff]
    %446 = vset.pattern.permute.xlu0 0
    %447 = vperm.xlu0 %446, %v429
    %v448 = vpop.permute.xlu0 %447
    %451 = vset.pattern.permute.xlu0 0
    %452 = vperm.xlu0 %451, %v430
    %v453 = vpop.permute.xlu0 %452
    %456 = vset.pattern.permute.xlu0 0
    %457 = vperm.xlu0 %456, %v431
    %v458 = vpop.permute.xlu0 %457
    %461 = vset.pattern.permute.xlu0 0
    %462 = vperm.xlu0 %461, %v432
    %v463 = vpop.permute.xlu0 %462
    %466 = vset.pattern.permute.xlu0 0
    %467 = vperm.xlu0 %466, %v433
    %v468 = vpop.permute.xlu0 %467
    %471 = vset.pattern.permute.xlu0 0
    %472 = vperm.xlu0 %471, %v434
    %v473 = vpop.permute.xlu0 %472
    %476 = vset.pattern.permute.xlu0 0
    %477 = vperm.xlu0 %476, %v435
    %v478 = vpop.permute.xlu0 %477
    %481 = vset.pattern.permute.xlu0 0
    %482 = vperm.xlu0 %481, %v436
    %v483 = vpop.permute.xlu0 %482
    %486 = vset.pattern.permute.xlu0 0
    %487 = vperm.xlu0 %486, %v437
    %v488 = vpop.permute.xlu0 %487
    %491 = vset.pattern.permute.xlu0 0
    %492 = vperm.xlu0 %491, %v438
    %v493 = vpop.permute.xlu0 %492
    %496 = vset.pattern.permute.xlu0 0
    %497 = vperm.xlu0 %496, %v439
    %v498 = vpop.permute.xlu0 %497
    %501 = vset.pattern.permute.xlu0 0
    %502 = vperm.xlu0 %501, %v440
    %v503 = vpop.permute.xlu0 %502
    %506 = vset.pattern.permute.xlu0 0
    %507 = vperm.xlu0 %506, %v441
    %v508 = vpop.permute.xlu0 %507
    %511 = vset.pattern.permute.xlu0 0
    %512 = vperm.xlu0 %511, %v442
    %v513 = vpop.permute.xlu0 %512
    %516 = vset.pattern.permute.xlu0 0
    %517 = vperm.xlu0 %516, %v443
    %v518 = vpop.permute.xlu0 %517
    %521 = vset.pattern.permute.xlu0 0
    %522 = vperm.xlu0 %521, %v444
    %v523 = vpop.permute.xlu0 %522
    %v525 = vadd.f32 %v397, %v448
    %v526 = vadd.f32 %v398, %v453
    %v527 = vadd.f32 %v399, %v458
    %v528 = vadd.f32 %v400, %v463
    %v529 = vadd.f32 %v401, %v468
    %v530 = vadd.f32 %v402, %v473
    %v531 = vadd.f32 %v403, %v478
    %v532 = vadd.f32 %v404, %v483
    %v533 = vadd.f32 %v405, %v488
    %v534 = vadd.f32 %v406, %v493
    %v535 = vadd.f32 %v407, %v498
    %v536 = vadd.f32 %v408, %v503
    %v537 = vadd.f32 %v409, %v508
    %v538 = vadd.f32 %v410, %v513
    %v539 = vadd.f32 %v411, %v518
    %v540 = vadd.f32 %v412, %v523
    %v541 = vadd.f32 %v413, %v448
    %v542 = vadd.f32 %v414, %v453
    %v543 = vadd.f32 %v415, %v458
    %v544 = vadd.f32 %v416, %v463
    %v545 = vadd.f32 %v417, %v468
    %v546 = vadd.f32 %v418, %v473
    %v547 = vadd.f32 %v419, %v478
    %v548 = vadd.f32 %v420, %v483
    %v549 = vadd.f32 %v421, %v488
    %v550 = vadd.f32 %v422, %v493
    %v551 = vadd.f32 %v423, %v498
    %v552 = vadd.f32 %v424, %v503
    %v553 = vadd.f32 %v425, %v508
    %v554 = vadd.f32 %v426, %v513
    %v555 = vadd.f32 %v427, %v518
    %v556 = vadd.f32 %v428, %v523
    %557 = vxpose.xlu0.b32.start [1/16] %v525, 128
    %558 = vxpose.xlu0.b32.cont [2/16] %v526, 128
    %559 = vxpose.xlu0.b32.cont [3/16] %v527, 128
    %560 = vxpose.xlu0.b32.cont [4/16] %v528, 128
    %561 = vxpose.xlu0.b32.cont [5/16] %v529, 128
    %562 = vxpose.xlu0.b32.cont [6/16] %v530, 128
    %563 = vxpose.xlu0.b32.cont [7/16] %v531, 128
    %564 = vxpose.xlu0.b32.cont [8/16] %v532, 128
    %565 = vxpose.xlu0.b32.cont [9/16] %v533, 128
    %566 = vxpose.xlu0.b32.cont [10/16] %v534, 128
    %567 = vxpose.xlu0.b32.cont [11/16] %v535, 128
    %568 = vxpose.xlu0.b32.cont [12/16] %v536, 128
    %569 = vxpose.xlu0.b32.cont [13/16] %v537, 128
    %570 = vxpose.xlu0.b32.cont [14/16] %v538, 128
    %571 = vxpose.xlu0.b32.cont [15/16] %v539, 128
    %572 = vxpose.xlu0.b32.end [16/16] %v540, 128
    %v573 = vpop.trf.xlu0
    %v574 = vpop.trf.xlu0
    %v575 = vpop.trf.xlu0
    %v576 = vpop.trf.xlu0
    %v577 = vpop.trf.xlu0
    %v578 = vpop.trf.xlu0
    %v579 = vpop.trf.xlu0
    %v580 = vpop.trf.xlu0
    %v581 = vpop.trf.xlu0
    %v582 = vpop.trf.xlu0
    %v583 = vpop.trf.xlu0
    %v584 = vpop.trf.xlu0
    %v585 = vpop.trf.xlu0
    %v586 = vpop.trf.xlu0
    %v587 = vpop.trf.xlu0
    %v588 = vpop.trf.xlu0
    %589 = vxpose.xlu0.b32.start [1/16] %v541, 128
    %590 = vxpose.xlu0.b32.cont [2/16] %v542, 128
    %591 = vxpose.xlu0.b32.cont [3/16] %v543, 128
    %592 = vxpose.xlu0.b32.cont [4/16] %v544, 128
    %593 = vxpose.xlu0.b32.cont [5/16] %v545, 128
    %594 = vxpose.xlu0.b32.cont [6/16] %v546, 128
    %595 = vxpose.xlu0.b32.cont [7/16] %v547, 128
    %596 = vxpose.xlu0.b32.cont [8/16] %v548, 128
    %597 = vxpose.xlu0.b32.cont [9/16] %v549, 128
    %598 = vxpose.xlu0.b32.cont [10/16] %v550, 128
    %599 = vxpose.xlu0.b32.cont [11/16] %v551, 128
    %600 = vxpose.xlu0.b32.cont [12/16] %v552, 128
    %601 = vxpose.xlu0.b32.cont [13/16] %v553, 128
    %602 = vxpose.xlu0.b32.cont [14/16] %v554, 128
    %603 = vxpose.xlu0.b32.cont [15/16] %v555, 128
    %604 = vxpose.xlu0.b32.end [16/16] %v556, 128
    %v605 = vpop.trf.xlu0
    %v606 = vpop.trf.xlu0
    %v607 = vpop.trf.xlu0
    %v608 = vpop.trf.xlu0
    %v609 = vpop.trf.xlu0
    %v610 = vpop.trf.xlu0
    %v611 = vpop.trf.xlu0
    %v612 = vpop.trf.xlu0
    %v613 = vpop.trf.xlu0
    %v614 = vpop.trf.xlu0
    %v615 = vpop.trf.xlu0
    %v616 = vpop.trf.xlu0
    %v617 = vpop.trf.xlu0
    %v618 = vpop.trf.xlu0
    %v619 = vpop.trf.xlu0
    %v620 = vpop.trf.xlu0
    %621 = vst [vmem:[#allocation2] sm:$0xff] %v573
    %622 = vst [vmem:[#allocation2 + $0x8] sm:$0xff] %v574
    %623 = vst [vmem:[#allocation2 + $0x10] sm:$0xff] %v575
    %624 = vst [vmem:[#allocation2 + $0x18] sm:$0xff] %v576
    %625 = vst [vmem:[#allocation2 + $0x20] sm:$0xff] %v577
    %626 = vst [vmem:[#allocation2 + $0x28] sm:$0xff] %v578
    %627 = vst [vmem:[#allocation2 + $0x30] sm:$0xff] %v579
    %628 = vst [vmem:[#allocation2 + $0x38] sm:$0xff] %v580
    %629 = vst [vmem:[#allocation2 + $0x40] sm:$0xff] %v605
    %630 = vst [vmem:[#allocation2 + $0x48] sm:$0xff] %v606
    %631 = vst [vmem:[#allocation2 + $0x50] sm:$0xff] %v607
    %632 = vst [vmem:[#allocation2 + $0x58] sm:$0xff] %v608
    %633 = vst [vmem:[#allocation2 + $0x60] sm:$0xff] %v609
    %634 = vst [vmem:[#allocation2 + $0x68] sm:$0xff] %v610
    %635 = vst [vmem:[#allocation2 + $0x70] sm:$0xff] %v611
    %636 = vst [vmem:[#allocation2 + $0x78] sm:$0xff] %v612
    // Predicated region
    $region14: #{tpu_custom_call.1} parent=1 // pred_check
      _
    $region15: #{tpu_custom_call.1} parent=1 // pred_check_branch
      %638 = sbr.rel (0) target = $region17
    $region16: #{tpu_custom_call.1} parent=1 // pred_region
      %s640 = ssub.s32 2048, 2048
      %641 = vsyncadd [#allocation3], %s640
      %s642 = sshll.u32 [#allocation2], 4
      %s643 = int_to_ptr.vmem [resolvable:$true] %s642
      %648 = dma.vmem_to_hbm [thread:$0]  %s643, 2048, %s3, [#allocation3], 128, 128, 8
    $region17: #{tpu_custom_call.1} parent=1 // pred_fallthru
      _
    // Predicated region
    $region18: #{tpu_custom_call.1} parent=1 // pred_check
      _
    $region19: #{tpu_custom_call.1} parent=1 // pred_check_branch
      %650 = sbr.rel (0) target = $region21
    $region20: #{tpu_custom_call.1} parent=1 // pred_region
      %651 = dma.done [#allocation3], 2048
    $region21: #{tpu_custom_call.1} parent=1 // pred_fallthru
      _
    %652 = vsyncpa [#allocation3], 1

</llo_original>
